<compile_context>
chip_gen: v7x
topology: tpu7x:2x2x1
jax: 0.10.0
libtpu: 0.0.40
codegen_flags: <defaults>
</compile_context>

<pallas_src>
import math

import jax
import jax.numpy as jnp
from jax.experimental import pallas as pl
from jax.experimental.pallas import tpu as pltpu


def _round_up(a: int, b: int) -> int:
    return ((a + b - 1) // b) * b


# ----------------------------------------------------------------------------
# Kernel: one folded affine map per row-tile.
#   x_ref: (tm, in_dim)  compute_dtype
#   w_ref: (in_dim, out_pad) compute_dtype   (constant index_map -> resident)
#   b_ref: (1, out_pad)  f32
#   o_ref: (tm, out_pad)
# ----------------------------------------------------------------------------
def _mlp_kernel(x_ref, w_ref, b_ref, o_ref):
    acc = jnp.dot(x_ref[...], w_ref[...], preferred_element_type=jnp.float32)
    o_ref[...] = (acc + b_ref[...]).astype(o_ref.dtype)


# ----------------------------------------------------------------------------
# One-time parameter prep (OFF the per-call hot path): fold the Linear chain.
#   params: list of (W, b) with W in PyTorch (out, in) layout.
# Returns (w_fold, b_fold, out_dim):
#   w_fold: (in_dim, out_pad) compute_dtype, out_pad = round_up(out_dim, 128)
#   b_fold: (1, out_pad) float32
# Padded columns are exactly zero and are sliced off after the kernel.
# NOTE: folding is valid because adn_fn=Identity; a non-Identity adn_fn would
# require the per-layer loop (not needed for this module configuration).
# ----------------------------------------------------------------------------
def prepare_params(params, compute_dtype=jnp.float32):
    w_fold = jnp.asarray(params[0][0], jnp.float32).T        # (in, out0)
    b_fold = jnp.asarray(params[0][1], jnp.float32)          # (out0,)
    for (w, b) in params[1:]:
        wt = jnp.asarray(w, jnp.float32).T                   # (prev_out, out)
        w_fold = w_fold @ wt
        b_fold = b_fold @ wt + jnp.asarray(b, jnp.float32)

    in_dim, out_dim = w_fold.shape
    out_pad = _round_up(out_dim, 128)
    w_pad = jnp.zeros((in_dim, out_pad), compute_dtype)
    w_pad = w_pad.at[:, :out_dim].set(w_fold.astype(compute_dtype))
    b_pad = jnp.zeros((1, out_pad), jnp.float32)
    b_pad = b_pad.at[:, :out_dim].set(b_fold[None, :])
    return w_pad, b_pad, out_dim


def _vmem_capacity_bytes():
    try:
        return int(pltpu.get_tpu_info().vmem_capacity_bytes)
    except Exception:
        return 64 << 20   # conservative fallback: v7x per-TensorCore VMEM


# ----------------------------------------------------------------------------
# Forward wrapper.
# ----------------------------------------------------------------------------
def mlp_forward(x, prepped, *, tm_max=512):
    w_pad, b_pad, out_dim = prepped
    in_dim, out_pad = w_pad.shape
    compute_dtype = w_pad.dtype
    itemsize = jnp.dtype(compute_dtype).itemsize
    sub = 8 * (4 // itemsize)                 # native sublane multiple (f32:8, bf16:16)

    lead_shape = x.shape[:-1]
    assert x.shape[-1] == in_dim, (x.shape, in_dim)
    x2 = x.reshape(-1, in_dim).astype(compute_dtype)   # bf16 path halves x DMA
    bflat = x2.shape[0]

    # Output dtype: keep f32 unless the caller already works in compute_dtype.
    out_dtype = x.dtype if jnp.dtype(x.dtype) == jnp.dtype(compute_dtype) else jnp.float32
    out_itemsize = jnp.dtype(out_dtype).itemsize

    # Row tile: >= 2 grid steps when the batch allows (v7x megacore + pipeline
    # overlap), and padding limited to ~one sublane group instead of < tm_max.
    min_steps = 2 if bflat >= 2 * sub else 1
    n_steps = max(pl.cdiv(bflat, tm_max), min_steps)
    tm = min(tm_max, _round_up(pl.cdiv(bflat, n_steps), sub))

    # Generation-aware VMEM budget.  The resident weight/bias are counted x2:
    # Pallas allocates buffer_count (default 2) copies per input even with a
    # constant index_map.
    cap = int(0.85 * _vmem_capacity_bytes())

    def vmem_need(tm_):
        return (2 * tm_ * in_dim * itemsize                       # x tile (double-buffered)
                + 2 * tm_ * out_pad * out_itemsize                # out tile (double-buffered)
                + 2 * (in_dim * out_pad * itemsize + out_pad * 4)  # resident params x2
                + 2 * tm_ * out_pad * 4)                          # f32 accumulator headroom

    while tm > sub and vmem_need(tm) > cap:
        tm = _round_up(max(tm // 2, sub), sub)
    # If the folded weight alone ever exceeded the cap (huge MLPs on v7x's
    # 64 MiB), an extra "arbitrary" N-tiling grid axis would be needed; not
    # required at these sizes.

    bpad = _round_up(bflat, tm)
    if bpad != bflat:
        x2 = jnp.pad(x2, ((0, bpad - bflat), (0, 0)))
    n_blocks = bpad // tm

    vmem_limit = int(min(max(2 * vmem_need(tm), 16 << 20), cap))

    # Honest (unpadded) cost estimate for XLA scheduling around the call.
    cost = pl.CostEstimate(
        flops=2 * bflat * in_dim * out_dim,
        transcendentals=0,
        bytes_accessed=(bflat * in_dim * itemsize
                        + in_dim * out_dim * itemsize + out_dim * 4
                        + bflat * out_dim * out_itemsize),
    )

    out = pl.pallas_call(
        _mlp_kernel,
        out_shape=jax.ShapeDtypeStruct((bpad, out_pad), out_dtype),
        grid=(n_blocks,),
        in_specs=[
            pl.BlockSpec((tm, in_dim), lambda i: (i, 0)),
            # Constant block index -> folded weight/bias stay VMEM-resident.
            pl.BlockSpec((in_dim, out_pad), lambda i: (0, 0)),
            pl.BlockSpec((1, out_pad), lambda i: (0, 0)),
        ],
        out_specs=pl.BlockSpec((tm, out_pad), lambda i: (i, 0)),
        compiler_params=pltpu.CompilerParams(
            dimension_semantics=("parallel",),
            vmem_limit_bytes=vmem_limit,
        ),
        cost_estimate=cost,
    )(x2, w_pad, b_pad)

    out = out[:bflat, :out_dim]
    return out.reshape(*lead_shape, out_dim).astype(x.dtype)


# ----------------------------------------------------------------------------
# Deterministic parameter construction mirroring torch.nn.Linear init:
# weight, bias ~ U(-1/sqrt(fan_in), 1/sqrt(fan_in)); W stored as (out, in).
# ----------------------------------------------------------------------------
def make_mlp_params(key, input_dim, output_dim, structure):
    dims = []
    curr_in = input_dim
    if len(structure) > 0:
        curr_out = structure[0]
        for i in range(1, len(structure)):
            dims.append((curr_in, curr_out))
            curr_in = curr_out
            curr_out = structure[i]
        dims.append((curr_in, curr_out))
    else:
        curr_out = curr_in
    dims.append((curr_out, output_dim))

    params = []
    for (fan_in, fan_out) in dims:
        key, kw, kb = jax.random.split(key, 3)
        bound = 1.0 / math.sqrt(fan_in)
        w = jax.random.uniform(kw, (fan_out, fan_in), jnp.float32, -bound, bound)
        b = jax.random.uniform(kb, (fan_out,), jnp.float32, -bound, bound)
        params.append((w, b))
    return params


def mlp_reference(x, params):
    """Pure-JAX reference matching the PyTorch forward (layer by layer)."""
    h = x.astype(jnp.float32)
    for (w, b) in params:
        h = h @ w.T + b
    return h


if __name__ == "__main__":
    key = jax.random.PRNGKey(0)

    input_dim, output_dim = 16, 8
    structure = [32, 48]      # -> Linear(16,32), Linear(32,48), Linear(48,8)

    k_param, k_x = jax.random.split(key)
    params = make_mlp_params(k_param, input_dim, output_dim, structure)

    # Input with leading dims [..., input_dim]: (batch=2, seq=8, 16)
    x = jax.random.normal(k_x, (2, 8, input_dim), jnp.float32)
    ref = mlp_reference(x, params)

    # f32 operand path (tight check; folding re-associates the chain, so allow
    # a few extra ulps vs. the layer-by-layer reference).
    prepped_f32 = prepare_params(params, compute_dtype=jnp.float32)
    out_f32 = jax.block_until_ready(mlp_forward(x, prepped_f32))
    assert out_f32.shape == (2, 8, output_dim), out_f32.shape
    assert jnp.allclose(out_f32, ref, atol=1e-4, rtol=1e-4), \
        float(jnp.max(jnp.abs(out_f32 - ref)))

    # bf16 MXU-operand path (native MXU format on v5e/v6e/v7x): bf16 weights
    # and x tile, f32 accumulation + f32 bias add inside the kernel.
    prepped_bf16 = prepare_params(params, compute_dtype=jnp.bfloat16)
    out_bf16 = jax.block_until_ready(mlp_forward(x, prepped_bf16))
    assert out_bf16.shape == (2, 8, output_dim), out_bf16.shape
    assert jnp.allclose(out_bf16, ref, atol=5e-2, rtol=5e-2), \
        float(jnp.max(jnp.abs(out_bf16 - ref)))

    print("KERNEL_OK")
</pallas_src>

<mosaic_0001>
module attributes {stable_mosaic.version = 11 : i64} {
  func.func @_mlp_kernel(%arg0: i32, %arg1: memref<8x16xf32, #tpu.memory_space<vmem>>, %arg2: memref<16x128xf32, #tpu.memory_space<vmem>>, %arg3: memref<1x128xf32, #tpu.memory_space<vmem>>, %arg4: memref<8x128xf32, #tpu.memory_space<vmem>>) attributes {dimension_semantics = [#tpu.dimension_semantics<parallel>], iteration_bounds = array<i64: 2>, scalar_prefetch = 0 : i64, scratch_operands = 0 : i64, tpu.core_type = #tpu.core_type<tc>, window_params = [{transform_indices = @transform_0, window_bounds = array<i64: 8, 16>}, {pipeline_mode = #tpu.pipeline_mode<synchronous>, transform_indices = @transform_1, window_bounds = array<i64: 16, 128>}, {pipeline_mode = #tpu.pipeline_mode<synchronous>, transform_indices = @transform_2, window_bounds = array<i64: 1, 128>}, {transform_indices = @transform_3, window_bounds = array<i64: 8, 128>}]} {
    %c0 = arith.constant 0 : index
    %c0_0 = arith.constant 0 : index
    %0 = vector.load %arg1[%c0, %c0_0] : memref<8x16xf32, #tpu.memory_space<vmem>>, vector<8x16xf32>
    %c0_1 = arith.constant 0 : index
    %c0_2 = arith.constant 0 : index
    %1 = vector.load %arg2[%c0_1, %c0_2] : memref<16x128xf32, #tpu.memory_space<vmem>>, vector<16x128xf32>
    %cst = arith.constant dense<0.000000e+00> : vector<8x128xf32>
    %2 = tpu.matmul %0, %1, %cst {dimension_numbers = #tpu.dot_dimension_numbers<[1], [0], [0], [1], [0, 0, 1, 1], [], []>} : vector<8x16xf32>, vector<16x128xf32>, vector<8x128xf32> -> vector<8x128xf32>
    %c0_3 = arith.constant 0 : index
    %c0_4 = arith.constant 0 : index
    %3 = vector.load %arg3[%c0_3, %c0_4] : memref<1x128xf32, #tpu.memory_space<vmem>>, vector<1x128xf32>
    %4 = vector.broadcast %3 : vector<1x128xf32> to vector<8x128xf32>
    %5 = arith.addf %2, %4 : vector<8x128xf32>
    %c0_5 = arith.constant 0 : index
    %c0_6 = arith.constant 0 : index
    %6 = vector.load %arg4[%c0_5, %c0_6] : memref<8x128xf32, #tpu.memory_space<vmem>>, vector<8x128xf32>
    tpu.vector_store %arg4[%c0_5, %c0_6], %5 {strides = array<i32>} : memref<8x128xf32, #tpu.memory_space<vmem>>, vector<8x128xf32>,
    return
  }
  func.func @transform_0(%arg0: i32) -> (i32, i32) {
    %c0_i32 = arith.constant 0 : i32
    %c0_i32_0 = arith.constant 0 : i32
    return %arg0, %c0_i32 : i32, i32
  }
  func.func @transform_1(%arg0: i32) -> (i32, i32) {
    %c0_i32 = arith.constant 0 : i32
    %c0_i32_0 = arith.constant 0 : i32
    %c0_i32_1 = arith.constant 0 : i32
    return %c0_i32, %c0_i32_0 : i32, i32
  }
  func.func @transform_2(%arg0: i32) -> (i32, i32) {
    %c0_i32 = arith.constant 0 : i32
    %c0_i32_0 = arith.constant 0 : i32
    %c0_i32_1 = arith.constant 0 : i32
    return %c0_i32, %c0_i32_0 : i32, i32
  }
  func.func @transform_3(%arg0: i32) -> (i32, i32) {
    %c0_i32 = arith.constant 0 : i32
    %c0_i32_0 = arith.constant 0 : i32
    return %arg0, %c0_i32 : i32, i32
  }
}

</mosaic_0001>

<llo_original>
// kernel: tpu_custom_call.1
$region0: #{tpu_custom_call.1}
  #allocation0 [shape = 'u32[]', space=smem, size = 0x4, offset = 0x4, fixed_abs, tag = 'smem constant byte address 0x4 - core index']
  #allocation1 [shape = 'u32[144,128]{1,0:T(1,128)}', space=vmem, size = 0x12000, scoped, tag = 'internal scratch']
  %s0 = inlined_call_operand.hbm [shape: f32[16,16], index: 0, kind: input, shape index: {}]
  %s1 = inlined_call_operand.hbm [shape: f32[16,128], index: 1, kind: input, shape index: {}]
  %s2 = inlined_call_operand.vmem [shape: f32[1,128], index: 2, kind: input, shape index: {}]
  %s3 = inlined_call_operand.hbm [shape: f32[16,128], index: 3, kind: output, shape index: {}]
  %s4 = sld [smem:[#allocation0]]
  $region53: #{tpu_custom_call.1} parent=0
    _
  %s6 = ssub.s32 1, %s4
  %s7 = scalar_select 0, %s6, %s4
  $region1: #{tpu_custom_call.1} parent=0
    #allocation2 [shape = 'u8[8192]{0}', space=vmem, size = 0x2000, scoped, tag = 'input window, operand 0']
    #allocation3 [shape = 's32[2]{0}', space=sflag, size = 0x8, scoped, tag = 'scoped memory for tpu_custom_call.1']
    #allocation4 [shape = 's32[2]{0}', space=sflag, size = 0x8, scoped, tag = 'scoped memory for tpu_custom_call.1']
    #allocation5 [shape = 'u8[8192]{0}', space=vmem, size = 0x2000, scoped, tag = 'input window, operand 1, single buffered']
    #allocation6 [shape = 's32[1]{0}', space=sflag, size = 0x4, scoped, tag = 'scoped memory for tpu_custom_call.1']
    #allocation7 [shape = 'u8[8192]{0}', space=vmem, size = 0x2000, scoped, tag = 'output window, operand 0']
    %8 = vsyncpa [#allocation3], 0
    %s9 = scalar_lea.sflag [#allocation3], 1
    %10 = vsyncpa %s9, 0
    %11 = vsyncpa [#allocation6], 0
    %12 = vsyncpa [#allocation4], 0
    %s13 = scalar_lea.sflag [#allocation4], 1
    %14 = vsyncpa %s13, 0
    loop: start=0, step=1, limit=4
    $region2: #{tpu_custom_call.1} parent=1 // loop_pre_header
      _
    $region3: #{tpu_custom_call.1} parent=1 // loop_header
      %s16 = sphi 0, %s20
      %p17 = scmp.ge.s32.totalorder %s16, 4
      %s26 = sphi 0, %s28
      %s29 = sphi 0, %s26
      %s30 = sphi 0, %s29
      %s46 = sphi 0, %s30
      %s50 = sphi 0, %s50
      %s52 = sphi 0, %s50
      %s53 = sphi 0, %s52
      %s67 = sphi 0, %s53
      %s71 = sphi 0, %s71
      %s73 = sphi 0, %s71
      %s74 = sphi 0, %s73
      %s88 = sphi 0, %s74
      %s94 = sphi 0, %s96
      %s97 = sphi 0, %s94
      %s98 = sphi 0, %s97
      %s114 = sphi 0, %s98
    $region4: #{tpu_custom_call.1} parent=1 // loop_header_branch
      %19 = sbr.rel (%p17) target = $region8
    $region5: #{tpu_custom_call.1} parent=1 // loop_body
      %s21 = ssub.s32 %s16, 1
      %s22 = ssub.s32 %s16, 2
      %s23 = sadd.s32 %s16, 1
      %s24 = ssub.s32 %s16, %s23
      %p25 = scmp.eq.s32.totalorder %s24, 0
      %s27 = sadd.s32 %s26, 1
      %s28 = scalar_select %p25, %s26, %s27
      %p31 = pneg %p25
      %p32 = scmp.eq.s32.totalorder %s16, 1
      %p33 = por %p31, %p32
      %p34 = scmp.ne.s32.totalorder %s26, %s29
      %p35 = scmp.eq.s32.totalorder %s16, 0
      %p36 = por %p34, %p35
      %p37 = scmp.ne.s32.totalorder %s26, %s29
      %p38 = scmp.eq.s32.totalorder %s21, 1
      %p39 = por %p37, %p38
      %p40 = scmp.ne.s32.totalorder %s29, %s30
      %p41 = scmp.eq.s32.totalorder %s21, 0
      %p42 = por %p40, %p41
      %p43 = scmp.ne.s32.totalorder %s29, %s30
      %p44 = scmp.eq.s32.totalorder %s22, 1
      %p45 = por %p43, %p44
      %p47 = scmp.ne.s32.totalorder %s30, %s46
      %p48 = scmp.eq.s32.totalorder %s22, 0
      %p49 = por %p47, %p48
      %s51 = sadd.s32 %s50, 1
      %p54 = scmp.eq.s32.totalorder %s16, 1
      %p55 = scmp.ne.s32.totalorder %s50, %s52
      %p56 = scmp.eq.s32.totalorder %s16, 0
      %p57 = por %p55, %p56
      %p58 = scmp.ne.s32.totalorder %s50, %s52
      %p59 = scmp.eq.s32.totalorder %s21, 1
      %p60 = por %p58, %p59
      %p61 = scmp.ne.s32.totalorder %s52, %s53
      %p62 = scmp.eq.s32.totalorder %s21, 0
      %p63 = por %p61, %p62
      %p64 = scmp.ne.s32.totalorder %s52, %s53
      %p65 = scmp.eq.s32.totalorder %s22, 1
      %p66 = por %p64, %p65
      %p68 = scmp.ne.s32.totalorder %s53, %s67
      %p69 = scmp.eq.s32.totalorder %s22, 0
      %p70 = por %p68, %p69
      %s72 = sadd.s32 %s71, 1
      %p75 = scmp.eq.s32.totalorder %s16, 1
      %p76 = scmp.ne.s32.totalorder %s71, %s73
      %p77 = scmp.eq.s32.totalorder %s16, 0
      %p78 = por %p76, %p77
      %p79 = scmp.ne.s32.totalorder %s71, %s73
      %p80 = scmp.eq.s32.totalorder %s21, 1
      %p81 = por %p79, %p80
      %p82 = scmp.ne.s32.totalorder %s73, %s74
      %p83 = scmp.eq.s32.totalorder %s21, 0
      %p84 = por %p82, %p83
      %p85 = scmp.ne.s32.totalorder %s73, %s74
      %p86 = scmp.eq.s32.totalorder %s22, 1
      %p87 = por %p85, %p86
      %p89 = scmp.ne.s32.totalorder %s74, %s88
      %p90 = scmp.eq.s32.totalorder %s22, 0
      %p91 = por %p89, %p90
      %s92 = ssub.s32 %s16, %s23
      %p93 = scmp.eq.s32.totalorder %s92, 0
      %s95 = sadd.s32 %s94, 1
      %s96 = scalar_select %p93, %s94, %s95
      %p99 = pneg %p93
      %p100 = scmp.eq.s32.totalorder %s16, 1
      %p101 = por %p99, %p100
      %p102 = scmp.ne.s32.totalorder %s94, %s97
      %p103 = scmp.eq.s32.totalorder %s16, 0
      %p104 = por %p102, %p103
      %p105 = scmp.ne.s32.totalorder %s94, %s97
      %p106 = scmp.eq.s32.totalorder %s21, 1
      %p107 = por %p105, %p106
      %p108 = scmp.ne.s32.totalorder %s97, %s98
      %p109 = scmp.eq.s32.totalorder %s21, 0
      %p110 = por %p108, %p109
      %p111 = scmp.ne.s32.totalorder %s97, %s98
      %p112 = scmp.eq.s32.totalorder %s22, 1
      %p113 = por %p111, %p112
      %p115 = scmp.ne.s32.totalorder %s98, %s114
      %p116 = scmp.eq.s32.totalorder %s22, 0
      %p117 = por %p115, %p116
      %p118 = scmp.le.s32.totalorder 1, %s16
      %p119 = scmp.lt.s32.totalorder %s16, 3
      %p120 = pnand %p118, %p119
      %p121 = pneg %p120
      // Predicated region
      $region9: #{tpu_custom_call.1} parent=5 // pred_check
        _
      $region10: #{tpu_custom_call.1} parent=5 // pred_check_branch
        %123 = sbr.rel (%p120) target = $region12
      $region11: #{tpu_custom_call.1} parent=5 // pred_region
        %s124 = ssub.s32 %s16, 1
        // Predicated region
        $region13: #{tpu_custom_call.1} parent=11 // pred_check
          %p125 = pneg %p63
        $region14: #{tpu_custom_call.1} parent=11 // pred_check_branch
          %127 = sbr.rel (%p125) target = $region16
        $region15: #{tpu_custom_call.1} parent=11 // pred_region
          %s129 = ssub.s32 256, 256
          %130 = vsyncadd [#allocation6], %s129
          %s131 = sshll.u32 [#allocation5], 4
          %s132 = int_to_ptr.vmem [resolvable:$true] %s131
          %137 = dma.hbm_to_vmem [thread:$0]  %s1, 256, %s132, [#allocation6], 128, 128, 8
        $region16: #{tpu_custom_call.1} parent=11 // pred_fallthru
          _
        // Predicated region
        $region17: #{tpu_custom_call.1} parent=11 // pred_check
          %p138 = pneg %p84
        $region18: #{tpu_custom_call.1} parent=11 // pred_check_branch
          %140 = sbr.rel (%p138) target = $region20
        $region19: #{tpu_custom_call.1} parent=11 // pred_region
          _
        $region20: #{tpu_custom_call.1} parent=11 // pred_fallthru
          _
      $region12: #{tpu_custom_call.1} parent=5 // pred_fallthru
        _
      %p141 = scmp.lt.s32.totalorder %s16, 2
      // Predicated region
      $region21: #{tpu_custom_call.1} parent=5 // pred_check
        %p142 = pneg %p141
      $region22: #{tpu_custom_call.1} parent=5 // pred_check_branch
        %144 = sbr.rel (%p142) target = $region24
      $region23: #{tpu_custom_call.1} parent=5 // pred_region
        // Predicated region
        $region25: #{tpu_custom_call.1} parent=23 // pred_check
          %p145 = pneg %p36
        $region26: #{tpu_custom_call.1} parent=23 // pred_check_branch
          %147 = sbr.rel (%p145) target = $region28
        $region27: #{tpu_custom_call.1} parent=23 // pred_region
          %s148 = sand.u32 %s26, 1
          %s149 = scalar_lea.sflag [#allocation3], %s148
          %s150 = sand.u32 %s26, 1
          %s151 = smul.addr %s150, 8
          %s152 = scalar_lea.vmem [#allocation2], %s151
          %s154 = ssub.s32 128, 128
          %155 = vsyncadd %s149, %s154
          %s156 = smul.addr %s16, 128
          %s157 = scalar_lea.hbm %s0, %s156
          %s159 = sshll.u32 %s152, 4
          %s160 = int_to_ptr.vmem [resolvable:$true] %s159
          %162 = dma.hbm_to_vmem [thread:$0]  %s157, 128, %s160, %s149
        $region28: #{tpu_custom_call.1} parent=23 // pred_fallthru
          _
      $region24: #{tpu_custom_call.1} parent=5 // pred_fallthru
        _
      %p163 = scmp.le.s32.totalorder 1, %s16
      %p164 = scmp.lt.s32.totalorder %s16, 3
      %p165 = pnand %p163, %p164
      %p166 = pneg %p165
      // Predicated region
      $region29: #{tpu_custom_call.1} parent=5 // pred_check
        _
      $region30: #{tpu_custom_call.1} parent=5 // pred_check_branch
        %168 = sbr.rel (%p165) target = $region32
      $region31: #{tpu_custom_call.1} parent=5 // pred_region
        %s169 = ssub.s32 %s16, 1
        %s170 = sand.u32 %s29, 1
        %s171 = scalar_lea.sflag [#allocation3], %s170
        %s172 = sand.u32 %s29, 1
        %s173 = smul.addr %s172, 8
        %s174 = scalar_lea.vmem [#allocation2], %s173
        // Predicated region
        $region33: #{tpu_custom_call.1} parent=31 // pred_check
          %p175 = pneg %p42
        $region34: #{tpu_custom_call.1} parent=31 // pred_check_branch
          %177 = sbr.rel (%p175) target = $region36
        $region35: #{tpu_custom_call.1} parent=31 // pred_region
          %178 = dma.done %s171, 128
        $region36: #{tpu_custom_call.1} parent=31 // pred_fallthru
          _
        // Predicated region
        $region37: #{tpu_custom_call.1} parent=31 // pred_check
          %p179 = pneg %p63
        $region38: #{tpu_custom_call.1} parent=31 // pred_check_branch
          %181 = sbr.rel (%p179) target = $region40
        $region39: #{tpu_custom_call.1} parent=31 // pred_region
          %182 = dma.done [#allocation6], 256
        $region40: #{tpu_custom_call.1} parent=31 // pred_fallthru
          _
        %s183 = sand.u32 %s29, 1
        %s184 = scalar_lea.sflag [#allocation3], %s183
        %s185 = sand.u32 %s29, 1
        %s186 = smul.addr %s185, 8
        %s187 = scalar_lea.vmem [#allocation2], %s186
        %p188 = pneg %p42
        %p189 = pneg %p39
        %p190 = pneg %p63
        %p191 = pneg %p60
        %p192 = pneg %p84
        %p193 = pneg %p81
        %p194 = pneg %p110
        %p195 = pneg %p107
        %s196 = sand.u32 %s97, 1
        %s197 = scalar_lea.sflag [#allocation4], %s196
        %s198 = sand.u32 %s97, 1
        %s199 = smul.addr %s198, 8
        %s200 = scalar_lea.vmem [#allocation7], %s199
        %v201 = vld [vmem:[%s174] sm:$0xff]
        %v202 = vld [vmem:[#allocation5] sm:$0xff]
        %v203 = vld [vmem:[#allocation5 + $0x8] sm:$0xff]
        %v204 = vld [vmem:[%s2] sm:$0x1]
        %v206 = vlaneseq
        %v207 = vshrl.u32 %v206, 7
        %v208 = vsub.s32 0, %v207
        %v209 = vrot.slane %v204, %v208
        %vm211 = vcmask 130048
        %v213 = vsel %vm211, %v201, 0
        %215 = vmatprep.subr.mxu0 0.0
        %216 = vmatpush1.msra.mxu0 %v202
        %217 = vmatprep.subr.mxu0 0.0
        %218 = vmatpush1.msra.mxu0 %v203
        %219 = vmatprep.subr.mxu0 0.0
        %220 = vmatpush1.msra.mxu0 0.0
        %221 = vmatprep.subr.mxu0 0.0
        %222 = vmatpush1.msra.mxu0 0.0
        %223 = vmatprep.subr.mxu0 0.0
        %224 = vmatpush1.msra.mxu0 0.0
        %225 = vmatprep.subr.mxu0 0.0
        %226 = vmatpush1.msra.mxu0 0.0
        %227 = vmatprep.subr.mxu0 0.0
        %228 = vmatpush1.msra.mxu0 0.0
        %229 = vmatprep.subr.mxu0 0.0
        %230 = vmatpush1.msra.mxu0 0.0
        %231 = vmatprep.subr.mxu0 0.0
        %232 = vmatpush1.msra.mxu0 0.0
        %233 = vmatprep.subr.mxu0 0.0
        %234 = vmatpush1.msra.mxu0 0.0
        %235 = vmatprep.subr.mxu0 0.0
        %236 = vmatpush1.msra.mxu0 0.0
        %237 = vmatprep.subr.mxu0 0.0
        %238 = vmatpush1.msra.mxu0 0.0
        %239 = vmatprep.subr.mxu0 0.0
        %240 = vmatpush1.msra.mxu0 0.0
        %241 = vmatprep.subr.mxu0 0.0
        %242 = vmatpush1.msra.mxu0 0.0
        %243 = vmatprep.subr.mxu0 0.0
        %244 = vmatpush1.msra.mxu0 0.0
        %245 = vmatprep.subr.mxu0 0.0
        %246 = vmatpush1.msra.mxu0 0.0
        %247 = vmatprep.subr.mxu0 0.0
        %248 = vmatpush1.msra.mxu0 0.0
        %249 = vmatprep.subr.mxu0 0.0
        %250 = vmatpush1.msra.mxu0 0.0
        %251 = vmatprep.subr.mxu0 0.0
        %252 = vmatpush1.msra.mxu0 0.0
        %253 = vmatprep.subr.mxu0 0.0
        %254 = vmatpush1.msra.mxu0 0.0
        %255 = vmatprep.subr.mxu0 0.0
        %256 = vmatpush1.msra.mxu0 0.0
        %257 = vmatprep.subr.mxu0 0.0
        %258 = vmatpush1.msra.mxu0 0.0
        %259 = vmatprep.subr.mxu0 0.0
        %260 = vmatpush1.msra.mxu0 0.0
        %261 = vmatprep.subr.mxu0 0.0
        %262 = vmatpush1.msra.mxu0 0.0
        %263 = vmatprep.subr.mxu0 0.0
        %264 = vmatpush1.msra.mxu0 0.0
        %265 = vmatprep.subr.mxu0 0.0
        %266 = vmatpush1.msra.mxu0 0.0
        %267 = vmatprep.subr.mxu0 0.0
        %268 = vmatpush1.msra.mxu0 0.0
        %269 = vmatprep.subr.mxu0 0.0
        %270 = vmatpush1.msra.mxu0 0.0
        %271 = vmatprep.subr.mxu0 0.0
        %272 = vmatpush1.msra.mxu0 0.0
        %273 = vmatprep.subr.mxu0 0.0
        %274 = vmatpush1.msra.mxu0 0.0
        %275 = vmatprep.subr.mxu0 0.0
        %276 = vmatpush1.msra.mxu0 0.0
        %277 = vmatprep.subr.mxu0 0.0
        %278 = vmatpush1.msra.mxu0 0.0
        %279 = vmatprep.mubr.f32.mxu0 0.0
        %280 = vmatmul.mubr.f32.gmra.mrb[0].mxu0 %v213
        %v281 = vpop.f32.mrb[0].mxu0
        %v282 = vadd.f32 %v209, %v281
        %v283 = vpop.f32.mrb[0].mxu0
        %284 = vdwg.mxu0
        %285 = vst [vmem:[%s200] sm:$0xff] %v282
        %s286 = sand.u32 %s97, 1
        %s287 = scalar_lea.sflag [#allocation4], %s286
        %s288 = sand.u32 %s97, 1
        %s289 = smul.addr %s288, 8
        %s290 = scalar_lea.vmem [#allocation7], %s289
        // Predicated region
        $region41: #{tpu_custom_call.1} parent=31 // pred_check
          %p291 = pneg %p107
        $region42: #{tpu_custom_call.1} parent=31 // pred_check_branch
          %293 = sbr.rel (%p291) target = $region44
        $region43: #{tpu_custom_call.1} parent=31 // pred_region
          %s295 = ssub.s32 128, 128
          %296 = vsyncadd %s287, %s295
          %s297 = smul.addr %s21, 128
          %s298 = scalar_lea.hbm %s3, %s297
          %s300 = sshll.u32 %s290, 4
          %s301 = int_to_ptr.vmem [resolvable:$true] %s300
          %303 = dma.vmem_to_hbm [thread:$0]  %s301, 128, %s298, %s287
        $region44: #{tpu_custom_call.1} parent=31 // pred_fallthru
          _
      $region32: #{tpu_custom_call.1} parent=5 // pred_fallthru
        _
      %p304 = scmp.le.s32.totalorder 2, %s16
      // Predicated region
      $region45: #{tpu_custom_call.1} parent=5 // pred_check
        %p305 = pneg %p304
      $region46: #{tpu_custom_call.1} parent=5 // pred_check_branch
        %307 = sbr.rel (%p305) target = $region48
      $region47: #{tpu_custom_call.1} parent=5 // pred_region
        %s308 = ssub.s32 %s16, 2
        // Predicated region
        $region49: #{tpu_custom_call.1} parent=47 // pred_check
          %p309 = pneg %p113
        $region50: #{tpu_custom_call.1} parent=47 // pred_check_branch
          %311 = sbr.rel (%p309) target = $region52
        $region51: #{tpu_custom_call.1} parent=47 // pred_region
          %s312 = sand.u32 %s98, 1
          %s313 = scalar_lea.sflag [#allocation4], %s312
          %s314 = sand.u32 %s98, 1
          %s315 = smul.addr %s314, 8
          %s316 = scalar_lea.vmem [#allocation7], %s315
          %317 = dma.done %s313, 128
        $region52: #{tpu_custom_call.1} parent=47 // pred_fallthru
          _
      $region48: #{tpu_custom_call.1} parent=5 // pred_fallthru
        _
    $region6: #{tpu_custom_call.1} parent=1 // loop_footer
      %s20 = sadd.s32 1, %s16
    $region7: #{tpu_custom_call.1} parent=1 // loop_footer_branch
      %15 = sbr.rel target = $region3
    $region8: #{tpu_custom_call.1} parent=1 // loop_exit
      _
    %318 = vsyncpa [#allocation3], 1
    %s319 = scalar_lea.sflag [#allocation3], 1
    %320 = vsyncpa %s319, 1
    %321 = vsyncpa [#allocation6], 1
    %322 = vsyncpa [#allocation4], 1
    %s323 = scalar_lea.sflag [#allocation4], 1
    %324 = vsyncpa %s323, 1

</llo_original>
